<compile_context>
chip_gen: v6e
topology: v6e:2x2x1
jax: 0.10.0
libtpu: 0.0.40
codegen_flags: <defaults>
</compile_context>

<pallas_src>
import functools

import jax
import jax.numpy as jnp
from jax.experimental import pallas as pl
from jax.experimental.pallas import tpu as pltpu


def _polygc_kernel(xt_ref, lap2_ref, w_ref, b_ref, o_ref, *,
                   poly_degree, pooling_size, batch_tile, in_features,
                   chunk_orders, matmul_dtype):
    """One batch tile per grid step.

    xt_ref  : (N, Bt*Fin)      matmul_dtype -- column b*Fin + i holds x[b, :, i]
    lap2_ref: (N, N)           matmul_dtype -- 2 * rescaled Laplacian (grid-invariant)
    w_ref   : (K*Fin, Fp)      matmul_dtype -- row k*Fin + i; Fout zero-padded to Fp
    b_ref   : (1, Fp)          float32      (grid-invariant)
    o_ref   : (Bt*(N//P), Fp)  float32      -- lane-dense (Fp multiple of 128)
    """
    K, P, Bt, Fin = poly_degree, pooling_size, batch_tile, in_features
    N = lap2_ref.shape[0]
    Fp = w_ref.shape[1]

    lap2 = lap2_ref[...]
    w = w_ref[...]
    t0 = xt_ref[...]                                   # (N, Bt*Fin)

    y = jnp.zeros((Bt * N, Fp), jnp.float32)           # projection accumulator

    def project(y_acc, pending):
        # pending: consecutive Chebyshev orders [(k, shadow_k), ...].
        k0, kn = pending[0][0], len(pending)
        # rows[b*N + n, j*Fin + i] = T_{k0+j}[n, feature i of batch element b]
        rows = jnp.concatenate(
            [jnp.concatenate([s[:, b * Fin:(b + 1) * Fin] for _, s in pending],
                             axis=1)
             for b in range(Bt)],
            axis=0)                                                # (Bt*N, kn*Fin)
        wk = w[k0 * Fin:(k0 + kn) * Fin, :]                        # (kn*Fin, Fp)
        return y_acc + jnp.dot(rows, wk, preferred_element_type=jnp.float32)

    def maybe_flush(y_acc, pending):
        if len(pending) == chunk_orders:
            return project(y_acc, pending), []
        return y_acc, pending

    # ---- Chebyshev recurrence, batch folded into the MXU lane axis ----
    # T0 = X, T1 = L X, T_k = 2 L T_{k-1} - T_{k-2}.  With lap2 = 2L (exact
    # power-of-two rescale):  T1 = 0.5 * lap2 @ T0,  T_k = lap2 @ T_{k-1} - T_{k-2}.
    # f32 carry for the subtraction; bf16 shadow feeds the MXU.
    pending = [(0, t0)]
    y, pending = maybe_flush(y, pending)
    tkm2 = t0
    tkm1_f32 = None
    tkm1_mxu = None
    for k in range(1, K):
        if k == 1:
            tk_f32 = 0.5 * jnp.dot(lap2, t0, preferred_element_type=jnp.float32)
        else:
            tk_f32 = jnp.dot(lap2, tkm1_mxu,
                             preferred_element_type=jnp.float32) - tkm2
            tkm2 = tkm1_f32
        tk_mxu = tk_f32.astype(matmul_dtype)           # no-op when matmul_dtype=f32
        tkm1_f32, tkm1_mxu = tk_f32, tk_mxu
        pending.append((k, tk_mxu))
        y, pending = maybe_flush(y, pending)
    if pending:
        y = project(y, pending)

    # ---- Max-pool over the node axis, then bias + ReLU (exact after the max) ----
    # Rows are b*N + n and N % P == 0, so pooling windows never cross batch elements.
    if P > 1:
        y = y.reshape(Bt * (N // P), P, Fp).max(axis=1)
    o_ref[...] = jnp.maximum(y + b_ref[...], 0.0).astype(o_ref.dtype)


def _const_block_spec(block_shape, index_map):
    """BlockSpec for grid-invariant operands; single-buffer when supported."""
    if hasattr(pl, "Buffered"):
        try:
            return pl.BlockSpec(block_shape, index_map,
                                pipeline_mode=pl.Buffered(1))
        except Exception:   # BlockSpec without pipeline_mode support
            pass
    return pl.BlockSpec(block_shape, index_map)


def _footprint_bytes(*, N, Fin, Fp, K, P, bt, kc, isize):
    """Per-grid-step VMEM estimate: pipeline buffers + in-kernel intermediates."""
    Np = N // P
    lanes = bt * Fin
    need = 0
    need += 2 * N * lanes * isize            # xt block (double-buffered)
    need += N * N * isize                    # 2L (grid-invariant, single-buffered)
    need += K * Fin * Fp * isize             # weight
    need += Fp * 4                           # bias
    need += 2 * bt * Np * Fp * 4             # output block (double-buffered)
    need += N * lanes * (2 * 4 + 2 * isize)  # f32 carries + MXU shadows
    need += kc * N * lanes * isize           # pending shadows awaiting projection
    need += 2 * kc * Fin * bt * N * isize    # row chunk + concat temporaries
    need += bt * N * Fp * 4                  # f32 projection accumulator
    need += 2 << 20                          # headroom for compiler temporaries
    return need


def _choose_batch_tile(B, N, Fin, P, footprint, budget):
    """Largest-value tile: ~256-512 lanes, >=2 grid steps, fits the VMEM budget."""
    Np = N // P

    def eligible(bt):
        if B % bt:
            return False
        if bt == B:
            return True
        return (bt * Fin) % 128 == 0 and (bt * Np) % 8 == 0

    cands = [bt for bt in range(1, B + 1) if eligible(bt)]
    fitting = [bt for bt in cands if footprint(bt) <= budget] or cands
    multi = [bt for bt in fitting if bt < B] or fitting     # prefer >=2 grid steps

    def score(bt):
        lanes = bt * Fin
        band = 0 if 256 <= lanes <= 512 else (1 if lanes >= 128 else 2)
        return (band, abs(lanes - 256), -bt)

    return min(multi, key=score)


def polygc_forward(x, laplacian, weight, bias, *, poly_degree, pooling_size,
                   batch_tile=None, chunk_orders=None,
                   matmul_dtype=jnp.bfloat16):
    """Pallas implementation of PolyGCLayer.forward.

    x        : (B, N, Fin) float32
    laplacian: (N, N)      float32 (dense equivalent of the sparse Laplacian)
    weight   : (Fin*K, Fout)  -- PyTorch layout: row index = i*K + k
    bias     : (1, 1, Fout)
    returns  : (B, N // pooling_size, Fout) in x.dtype

    matmul_dtype=jnp.bfloat16 (default) feeds bf16 to the MXU with f32
    accumulation; pass jnp.float32 to match torch f32 numerics bit-closely.
    """
    B, N, Fin = x.shape
    Fout = weight.shape[1]
    K, P = poly_degree, pooling_size
    assert weight.shape[0] == Fin * K
    assert N % P == 0
    Np = N // P
    Fp = ((Fout + 127) // 128) * 128          # lane-dense output (no vst.msk)
    isize = jnp.dtype(matmul_dtype).itemsize

    # Chebyshev orders per feature-projection chunk: big enough that the MXU
    # contraction depth is >=128 when Fin is small, small enough to bound liveness.
    kc = chunk_orders if chunk_orders is not None else min(K, max(1, -(-128 // Fin)))
    assert 1 <= kc <= K

    try:
        phys_vmem = int(pltpu.get_tpu_info().vmem_capacity_bytes)
    except Exception:
        phys_vmem = 64 << 20                  # conservative (v7x per-TensorCore)
    budget = phys_vmem - (8 << 20)

    def footprint(bt):
        return _footprint_bytes(N=N, Fin=Fin, Fp=Fp, K=K, P=P, bt=bt,
                                kc=kc, isize=isize)

    if batch_tile is None:
        Bt = _choose_batch_tile(B, N, Fin, P, footprint, budget)
    else:
        Bt = batch_tile
        assert B % Bt == 0
        assert Bt == B or ((Bt * Fin) % 128 == 0 and (Bt * Np) % 8 == 0), \
            "batch tile must keep lane blocks 128-aligned and sublane blocks 8-aligned"

    # ---- one-time XLA-side plumbing (casts / reorders happen once, not per step) ----
    # Batch folded into the lane axis of the Chebyshev operand: xt[n, b*Fin+i] = x[b,n,i].
    xt = jnp.transpose(x, (1, 0, 2)).reshape(N, B * Fin).astype(matmul_dtype)
    # Chebyshev "2*" folded into the Laplacian (exact power-of-two scale).
    # TODO(synk): for very large N (N*N*isize approaching VMEM), stream Laplacian
    # row blocks via a second grid axis instead of keeping the full (N,N) resident.
    lap2 = (2.0 * laplacian).astype(matmul_dtype)
    # Weight rows reordered from torch's (i*K + k) to (k*Fin + i); Fout padded to Fp.
    w_r = jnp.transpose(weight.reshape(Fin, K, Fout), (1, 0, 2)).reshape(K * Fin, Fout)
    w_p = jnp.pad(w_r, ((0, 0), (0, Fp - Fout))).astype(matmul_dtype)
    b_p = jnp.pad(bias.reshape(1, Fout), ((0, 0), (0, Fp - Fout))).astype(jnp.float32)

    need = footprint(Bt)
    vmem_limit = int(min(budget, max(need, 32 << 20)))

    kernel = functools.partial(
        _polygc_kernel,
        poly_degree=K, pooling_size=P, batch_tile=Bt, in_features=Fin,
        chunk_orders=kc, matmul_dtype=matmul_dtype,
    )

    out = pl.pallas_call(
        kernel,
        out_shape=jax.ShapeDtypeStruct((B * Np, Fp), jnp.float32),
        grid_spec=pltpu.PrefetchScalarGridSpec(
            num_scalar_prefetch=0,
            grid=(B // Bt,),
            in_specs=[
                pl.BlockSpec((N, Bt * Fin), lambda g: (0, g)),
                _const_block_spec((N, N), lambda g: (0, 0)),
                _const_block_spec((K * Fin, Fp), lambda g: (0, 0)),
                _const_block_spec((1, Fp), lambda g: (0, 0)),
            ],
            out_specs=pl.BlockSpec((Bt * Np, Fp), lambda g: (g, 0)),
        ),
        compiler_params=pltpu.CompilerParams(
            dimension_semantics=("parallel",),
            vmem_limit_bytes=vmem_limit,
        ),
    )(xt, lap2, w_p, b_p)

    return out.reshape(B, Np, Fp)[:, :, :Fout].astype(x.dtype)


def polygc_reference(x, laplacian, weight, bias, *, poly_degree, pooling_size):
    """Pure-JAX transliteration of the PyTorch forward (for verification)."""
    B, N, Fin = x.shape
    Fout = weight.shape[1]
    K = poly_degree
    x0 = jnp.transpose(x, (1, 2, 0)).reshape(N, Fin * B)
    xs = [x0]
    if K > 1:
        x1 = laplacian @ x0
        xs.append(x1)
    for _ in range(2, K):
        x2 = 2.0 * (laplacian @ x1) - x0
        xs.append(x2)
        x0, x1 = x1, x2
    xx = jnp.stack(xs, axis=0).reshape(K, N, Fin, B)
    xx = jnp.transpose(xx, (3, 1, 2, 0)).reshape(B * N, Fin * K)
    y = (xx @ weight).reshape(B, N, Fout)
    y = jax.nn.relu(y + bias)
    if pooling_size > 1:
        y = y.reshape(B, N // pooling_size, pooling_size, Fout).max(axis=2)
    return y


def truncated_normal(key, shape, std=0.1):
    return std * jax.random.truncated_normal(key, -2.0, 2.0, shape, jnp.float32)


if __name__ == "__main__":
    # Small, deterministic problem consistent with the module:
    batch = 2
    node_num = 16
    in_features = 4
    out_channels = 8
    poly_degree = 3          # Chebyshev order K
    pooling_size = 2
    in_channels = in_features * poly_degree   # what the module's weight expects

    key = jax.random.PRNGKey(0)
    kx, kw, kb = jax.random.split(key, 3)

    # Parameters (truncated normal, std=0.1 -- matching reset_parameters).
    weight = truncated_normal(kw, (in_channels, out_channels))
    bias = truncated_normal(kb, (1, 1, out_channels))

    # Deterministic dense rescaled graph Laplacian on a ring graph.
    # (Toy rescale by 2/max(deg) rather than 2/lambda_max -- fine for validation.)
    adj = jnp.zeros((node_num, node_num), jnp.float32)
    idx = jnp.arange(node_num)
    adj = adj.at[idx, (idx + 1) % node_num].set(1.0)
    adj = adj.at[(idx + 1) % node_num, idx].set(1.0)
    deg = adj.sum(axis=1)
    lap = jnp.diag(deg) - adj
    laplacian = (2.0 / jnp.max(deg)) * lap - jnp.eye(node_num, dtype=jnp.float32)

    x = jax.random.normal(kx, (batch, node_num, in_features), jnp.float32)

    ref = polygc_reference(x, laplacian, weight, bias,
                           poly_degree=poly_degree, pooling_size=pooling_size)

    # f32-MXU path: tight check against the pure-JAX reference.
    out_f32 = jax.block_until_ready(polygc_forward(
        x, laplacian, weight, bias, poly_degree=poly_degree,
        pooling_size=pooling_size, matmul_dtype=jnp.float32))
    assert out_f32.shape == (batch, node_num // pooling_size, out_channels)
    assert jnp.allclose(out_f32, ref, rtol=1e-4, atol=1e-5)

    # Default bf16-MXU path (f32 accumulation): looser tolerance, since bf16
    # rounding compounds through the K-step Chebyshev recurrence.
    out_bf16 = jax.block_until_ready(polygc_forward(
        x, laplacian, weight, bias, poly_degree=poly_degree,
        pooling_size=pooling_size))
    assert out_bf16.shape == (batch, node_num // pooling_size, out_channels)
    assert jnp.allclose(out_bf16, ref, rtol=1e-1, atol=1e-1)

    print("KERNEL_OK")
</pallas_src>

<mosaic_0001>
module attributes {stable_mosaic.version = 11 : i64} {
  func.func @_polygc_kernel(%arg0: i32, %arg1: memref<16x8xf32, #tpu.memory_space<vmem>>, %arg2: memref<16x16xf32, #tpu.memory_space<vmem>>, %arg3: memref<12x128xf32, #tpu.memory_space<vmem>>, %arg4: memref<1x128xf32, #tpu.memory_space<vmem>>, %arg5: memref<16x128xf32, #tpu.memory_space<vmem>>) attributes {dimension_semantics = [#tpu.dimension_semantics<parallel>], iteration_bounds = array<i64: 1>, scalar_prefetch = 0 : i64, scratch_operands = 0 : i64, tpu.core_type = #tpu.core_type<tc>, window_params = [{transform_indices = @transform_0, window_bounds = array<i64: 16, 8>}, {pipeline_mode = #tpu.pipeline_mode<synchronous>, transform_indices = @transform_1, window_bounds = array<i64: 16, 16>}, {pipeline_mode = #tpu.pipeline_mode<synchronous>, transform_indices = @transform_2, window_bounds = array<i64: 12, 128>}, {pipeline_mode = #tpu.pipeline_mode<synchronous>, transform_indices = @transform_3, window_bounds = array<i64: 1, 128>}, {transform_indices = @transform_4, window_bounds = array<i64: 16, 128>}]} {
    %c0 = arith.constant 0 : index
    %c0_0 = arith.constant 0 : index
    %0 = vector.load %arg2[%c0, %c0_0] : memref<16x16xf32, #tpu.memory_space<vmem>>, vector<16x16xf32>
    %c0_1 = arith.constant 0 : index
    %c0_2 = arith.constant 0 : index
    %1 = vector.load %arg3[%c0_1, %c0_2] : memref<12x128xf32, #tpu.memory_space<vmem>>, vector<12x128xf32>
    %c0_3 = arith.constant 0 : index
    %c0_4 = arith.constant 0 : index
    %2 = vector.load %arg1[%c0_3, %c0_4] : memref<16x8xf32, #tpu.memory_space<vmem>>, vector<16x8xf32>
    %cst = arith.constant 0.000000e+00 : f32
    %3 = vector.broadcast %cst : f32 to vector<32x128xf32>
    %cst_5 = arith.constant dense<0.000000e+00> : vector<16x8xf32>
    %4 = tpu.matmul %0, %2, %cst_5 {dimension_numbers = #tpu.dot_dimension_numbers<[1], [0], [0], [1], [0, 0, 1, 1], [], []>} : vector<16x16xf32>, vector<16x8xf32>, vector<16x8xf32> -> vector<16x8xf32>
    %cst_6 = arith.constant 5.000000e-01 : f32
    %5 = vector.broadcast %cst_6 : f32 to vector<16x8xf32>
    %6 = arith.mulf %5, %4 : vector<16x8xf32>
    %cst_7 = arith.constant dense<0.000000e+00> : vector<16x8xf32>
    %7 = tpu.matmul %0, %6, %cst_7 {dimension_numbers = #tpu.dot_dimension_numbers<[1], [0], [0], [1], [0, 0, 1, 1], [], []>} : vector<16x16xf32>, vector<16x8xf32>, vector<16x8xf32> -> vector<16x8xf32>
    %8 = arith.subf %7, %2 : vector<16x8xf32>
    %9 = vector.extract_strided_slice %2 {offsets = [0, 0], sizes = [16, 4], strides = [1, 1]} : vector<16x8xf32> to vector<16x4xf32>
    %10 = vector.extract_strided_slice %6 {offsets = [0, 0], sizes = [16, 4], strides = [1, 1]} : vector<16x8xf32> to vector<16x4xf32>
    %11 = vector.extract_strided_slice %8 {offsets = [0, 0], sizes = [16, 4], strides = [1, 1]} : vector<16x8xf32> to vector<16x4xf32>
    %12 = tpu.concatenate %9, %10, %11 in 1 : vector<16x4xf32>, vector<16x4xf32>, vector<16x4xf32> -> vector<16x12xf32>
    %13 = vector.extract_strided_slice %2 {offsets = [0, 4], sizes = [16, 4], strides = [1, 1]} : vector<16x8xf32> to vector<16x4xf32>
    %14 = vector.extract_strided_slice %6 {offsets = [0, 4], sizes = [16, 4], strides = [1, 1]} : vector<16x8xf32> to vector<16x4xf32>
    %15 = vector.extract_strided_slice %8 {offsets = [0, 4], sizes = [16, 4], strides = [1, 1]} : vector<16x8xf32> to vector<16x4xf32>
    %16 = tpu.concatenate %13, %14, %15 in 1 : vector<16x4xf32>, vector<16x4xf32>, vector<16x4xf32> -> vector<16x12xf32>
    %17 = tpu.concatenate %12, %16 in 0 : vector<16x12xf32>, vector<16x12xf32> -> vector<32x12xf32>
    %cst_8 = arith.constant dense<0.000000e+00> : vector<32x128xf32>
    %18 = tpu.matmul %17, %1, %cst_8 {dimension_numbers = #tpu.dot_dimension_numbers<[1], [0], [0], [1], [0, 0, 1, 1], [], []>} : vector<32x12xf32>, vector<12x128xf32>, vector<32x128xf32> -> vector<32x128xf32>
    %19 = arith.addf %3, %18 : vector<32x128xf32>
    %20 = vector.shape_cast %19 : vector<32x128xf32> to vector<16x2x128xf32>
    %cst_9 = arith.constant dense<0xFF800000> : vector<16x128xf32>
    %21 = vector.multi_reduction <maximumf>, %20, %cst_9 [1] : vector<16x2x128xf32> to vector<16x128xf32>
    %c0_10 = arith.constant 0 : index
    %c0_11 = arith.constant 0 : index
    %22 = vector.load %arg4[%c0_10, %c0_11] : memref<1x128xf32, #tpu.memory_space<vmem>>, vector<1x128xf32>
    %23 = vector.broadcast %22 : vector<1x128xf32> to vector<16x128xf32>
    %24 = arith.addf %21, %23 : vector<16x128xf32>
    %cst_12 = arith.constant 0.000000e+00 : f32
    %25 = vector.broadcast %cst_12 : f32 to vector<16x128xf32>
    %26 = arith.maximumf %24, %25 : vector<16x128xf32>
    %c0_13 = arith.constant 0 : index
    %c0_14 = arith.constant 0 : index
    %27 = vector.load %arg5[%c0_13, %c0_14] : memref<16x128xf32, #tpu.memory_space<vmem>>, vector<16x128xf32>
    tpu.vector_store %arg5[%c0_13, %c0_14], %26 {strides = array<i32>} : memref<16x128xf32, #tpu.memory_space<vmem>>, vector<16x128xf32>,
    return
  }
  func.func @transform_0(%arg0: i32) -> (i32, i32) {
    %c0_i32 = arith.constant 0 : i32
    %c0_i32_0 = arith.constant 0 : i32
    return %c0_i32, %arg0 : i32, i32
  }
  func.func @transform_1(%arg0: i32) -> (i32, i32) {
    %c0_i32 = arith.constant 0 : i32
    %c0_i32_0 = arith.constant 0 : i32
    %c0_i32_1 = arith.constant 0 : i32
    return %c0_i32, %c0_i32_0 : i32, i32
  }
  func.func @transform_2(%arg0: i32) -> (i32, i32) {
    %c0_i32 = arith.constant 0 : i32
    %c0_i32_0 = arith.constant 0 : i32
    %c0_i32_1 = arith.constant 0 : i32
    return %c0_i32, %c0_i32_0 : i32, i32
  }
  func.func @transform_3(%arg0: i32) -> (i32, i32) {
    %c0_i32 = arith.constant 0 : i32
    %c0_i32_0 = arith.constant 0 : i32
    %c0_i32_1 = arith.constant 0 : i32
    return %c0_i32, %c0_i32_0 : i32, i32
  }
  func.func @transform_4(%arg0: i32) -> (i32, i32) {
    %c0_i32 = arith.constant 0 : i32
    %c0_i32_0 = arith.constant 0 : i32
    return %arg0, %c0_i32 : i32, i32
  }
}

</mosaic_0001>

<llo_original>
// kernel: tpu_custom_call.1
$region0: #{tpu_custom_call.1}
  #allocation0 [shape = 'u32[]', space=smem, size = 0x4, offset = 0x4, fixed_abs, tag = 'smem constant byte address 0x4 - core index']
  #allocation1 [shape = 'u32[144,128]{1,0:T(1,128)}', space=vmem, size = 0x12000, scoped, tag = 'internal scratch']
  %s0 = inlined_call_operand.vmem [shape: f32[16,8], index: 0, kind: input, shape index: {}]
  %s1 = inlined_call_operand.vmem [shape: f32[16,16], index: 1, kind: input, shape index: {}]
  %s2 = inlined_call_operand.hbm [shape: f32[12,128], index: 2, kind: input, shape index: {}]
  %s3 = inlined_call_operand.vmem [shape: f32[1,128], index: 3, kind: input, shape index: {}]
  %s4 = inlined_call_operand.hbm [shape: f32[16,128], index: 4, kind: output, shape index: {}]
  %s5 = sld [smem:[#allocation0]]
  $region30: #{tpu_custom_call.1} parent=0
    _
  %s7 = ssub.s32 1, %s5
  %s8 = scalar_select 0, %s7, %s5
  $region1: #{tpu_custom_call.1} parent=0
    #allocation2 [shape = 'u8[8192]{0}', space=vmem, size = 0x2000, scoped, tag = 'input window, operand 2, single buffered']
    #allocation3 [shape = 's32[1]{0}', space=sflag, size = 0x4, scoped, tag = 'scoped memory for tpu_custom_call.1']
    #allocation4 [shape = 's32[1]{0}', space=sflag, size = 0x4, scoped, tag = 'scoped memory for tpu_custom_call.1']
    #allocation5 [shape = 'u8[8192]{0}', space=vmem, size = 0x2000, scoped, tag = 'output window, operand 0, single buffered']
    %9 = vsyncpa [#allocation3], 0
    %10 = vsyncpa [#allocation4], 0
    // Predicated region
    $region2: #{tpu_custom_call.1} parent=1 // pred_check
      _
    $region3: #{tpu_custom_call.1} parent=1 // pred_check_branch
      %12 = sbr.rel (0) target = $region5
    $region4: #{tpu_custom_call.1} parent=1 // pred_region
      _
    $region5: #{tpu_custom_call.1} parent=1 // pred_fallthru
      _
    // Predicated region
    $region6: #{tpu_custom_call.1} parent=1 // pred_check
      _
    $region7: #{tpu_custom_call.1} parent=1 // pred_check_branch
      %14 = sbr.rel (0) target = $region9
    $region8: #{tpu_custom_call.1} parent=1 // pred_region
      _
    $region9: #{tpu_custom_call.1} parent=1 // pred_fallthru
      _
    // Predicated region
    $region10: #{tpu_custom_call.1} parent=1 // pred_check
      _
    $region11: #{tpu_custom_call.1} parent=1 // pred_check_branch
      %16 = sbr.rel (0) target = $region13
    $region12: #{tpu_custom_call.1} parent=1 // pred_region
      %s18 = ssub.s32 256, 256
      %19 = vsyncadd [#allocation3], %s18
      %s20 = sshll.u32 [#allocation2], 4
      %s21 = int_to_ptr.vmem [resolvable:$true] %s20
      %26 = dma.hbm_to_vmem [thread:$0]  %s2, 256, %s21, [#allocation3], 128, 128, 8
    $region13: #{tpu_custom_call.1} parent=1 // pred_fallthru
      _
    // Predicated region
    $region14: #{tpu_custom_call.1} parent=1 // pred_check
      _
    $region15: #{tpu_custom_call.1} parent=1 // pred_check_branch
      %28 = sbr.rel (0) target = $region17
    $region16: #{tpu_custom_call.1} parent=1 // pred_region
      _
    $region17: #{tpu_custom_call.1} parent=1 // pred_fallthru
      _
    // Predicated region
    $region18: #{tpu_custom_call.1} parent=1 // pred_check
      _
    $region19: #{tpu_custom_call.1} parent=1 // pred_check_branch
      %30 = sbr.rel (0) target = $region21
    $region20: #{tpu_custom_call.1} parent=1 // pred_region
      %31 = dma.done [#allocation3], 256
    $region21: #{tpu_custom_call.1} parent=1 // pred_fallthru
      _
    %v32 = vld [vmem:[%s1] sm:$0xff]
    %v33 = vld [vmem:[%s1 + $0x8] sm:$0xff]
    %v34 = vld [vmem:[#allocation2] sm:$0xff]
    %v35 = vld [vmem:[#allocation2 + $0x8] sm:$0xf]
    %v36 = vld [vmem:[%s0] sm:$0xff]
    %v37 = vld [vmem:[%s0 + $0x8] sm:$0xff]
    %vm38 = vcmask 130048
    %v40 = vsel %vm38, %v32, 0
    %v43 = vsel %vm38, %v33, 0
    %45 = vmatprep.subr.mxu0 0.0
    %46 = vmatpush1.msra.mxu0 0.0
    %47 = vmatprep.subr.mxu0 0.0
    %48 = vmatpush1.msra.mxu0 0.0
    %49 = vmatprep.subr.mxu0 0.0
    %50 = vmatpush1.msra.mxu0 0.0
    %51 = vmatprep.subr.mxu0 0.0
    %52 = vmatpush1.msra.mxu0 0.0
    %53 = vmatprep.subr.mxu0 0.0
    %54 = vmatpush1.msra.mxu0 0.0
    %55 = vmatprep.subr.mxu0 0.0
    %56 = vmatpush1.msra.mxu0 0.0
    %57 = vmatprep.subr.mxu0 0.0
    %58 = vmatpush1.msra.mxu0 0.0
    %59 = vmatprep.subr.mxu0 0.0
    %60 = vmatpush1.msra.mxu0 0.0
    %61 = vmatprep.subr.mxu0 0.0
    %62 = vmatpush1.msra.mxu0 0.0
    %63 = vmatprep.subr.mxu0 0.0
    %64 = vmatpush1.msra.mxu0 0.0
    %65 = vmatprep.subr.mxu0 0.0
    %66 = vmatpush1.msra.mxu0 0.0
    %67 = vmatprep.subr.mxu0 0.0
    %68 = vmatpush1.msra.mxu0 0.0
    %69 = vmatprep.subr.mxu0 0.0
    %70 = vmatpush1.msra.mxu0 0.0
    %71 = vmatprep.subr.mxu0 0.0
    %72 = vmatpush1.msra.mxu0 0.0
    %73 = vmatprep.subr.mxu0 0.0
    %74 = vmatpush1.msra.mxu0 %v37
    %75 = vmatprep.subr.mxu0 0.0
    %76 = vmatpush1.msra.mxu0 %v36
    %77 = vmatprep.subr.mxu0 0.0
    %78 = vmatpush2.msra.mxu0 0.0
    %79 = vmatprep.subr.mxu0 0.0
    %80 = vmatpush2.msra.mxu0 0.0
    %81 = vmatprep.subr.mxu0 0.0
    %82 = vmatpush2.msra.mxu0 0.0
    %83 = vmatprep.subr.mxu0 0.0
    %84 = vmatpush2.msra.mxu0 0.0
    %85 = vmatprep.subr.mxu0 0.0
    %86 = vmatpush2.msra.mxu0 0.0
    %87 = vmatprep.subr.mxu0 0.0
    %88 = vmatpush2.msra.mxu0 0.0
    %89 = vmatprep.subr.mxu0 0.0
    %90 = vmatpush2.msra.mxu0 0.0
    %91 = vmatprep.subr.mxu0 0.0
    %92 = vmatpush2.msra.mxu0 0.0
    %93 = vmatprep.subr.mxu0 0.0
    %94 = vmatpush2.msra.mxu0 0.0
    %95 = vmatprep.subr.mxu0 0.0
    %96 = vmatpush2.msra.mxu0 0.0
    %97 = vmatprep.subr.mxu0 0.0
    %98 = vmatpush2.msra.mxu0 0.0
    %99 = vmatprep.subr.mxu0 0.0
    %100 = vmatpush2.msra.mxu0 0.0
    %101 = vmatprep.subr.mxu0 0.0
    %102 = vmatpush2.msra.mxu0 0.0
    %103 = vmatprep.subr.mxu0 0.0
    %104 = vmatpush2.msra.mxu0 0.0
    %105 = vmatprep.subr.mxu0 0.0
    %106 = vmatpush2.msra.mxu0 0.0
    %107 = vmatprep.subr.mxu0 0.0
    %108 = vmatpush2.msra.mxu0 0.0
    %109 = vmatprep.mubr.f32.mxu0 0.0
    %110 = vmatmul.mubr.f32.gmra.mxu0 %v40
    %v111 = vpop.f32.mrf.mxu0
    %v112 = vadd.f32 0.0, %v111
    %v113 = vpop.f32.mrf.mxu0
    %114 = vmatprep.mubr.f32.mxu0 0.0
    %115 = vmatmul.mubr.f32.gmra.mxu0 %v43
    %v116 = vpop.f32.mrf.mxu0
    %v117 = vadd.f32 0.0, %v116
    %v118 = vpop.f32.mrf.mxu0
    %119 = vdwg.mxu0
    %v120 = vmul.f32 %v112, 0.5
    %v121 = vmul.f32 %v117, 0.5
    %122 = vmatprep.subr.mxu0 0.0
    %123 = vmatpush1.msra.mxu0 0.0
    %124 = vmatprep.subr.mxu0 0.0
    %125 = vmatpush1.msra.mxu0 0.0
    %126 = vmatprep.subr.mxu0 0.0
    %127 = vmatpush1.msra.mxu0 0.0
    %128 = vmatprep.subr.mxu0 0.0
    %129 = vmatpush1.msra.mxu0 0.0
    %130 = vmatprep.subr.mxu0 0.0
    %131 = vmatpush1.msra.mxu0 0.0
    %132 = vmatprep.subr.mxu0 0.0
    %133 = vmatpush1.msra.mxu0 0.0
    %134 = vmatprep.subr.mxu0 0.0
    %135 = vmatpush1.msra.mxu0 0.0
    %136 = vmatprep.subr.mxu0 0.0
    %137 = vmatpush1.msra.mxu0 0.0
    %138 = vmatprep.subr.mxu0 0.0
    %139 = vmatpush1.msra.mxu0 0.0
    %140 = vmatprep.subr.mxu0 0.0
    %141 = vmatpush1.msra.mxu0 0.0
    %142 = vmatprep.subr.mxu0 0.0
    %143 = vmatpush1.msra.mxu0 0.0
    %144 = vmatprep.subr.mxu0 0.0
    %145 = vmatpush1.msra.mxu0 0.0
    %146 = vmatprep.subr.mxu0 0.0
    %147 = vmatpush1.msra.mxu0 0.0
    %148 = vmatprep.subr.mxu0 0.0
    %149 = vmatpush1.msra.mxu0 0.0
    %150 = vmatprep.subr.mxu0 0.0
    %151 = vmatpush1.msra.mxu0 %v121
    %152 = vmatprep.subr.mxu0 0.0
    %153 = vmatpush1.msra.mxu0 %v120
    %154 = vmatprep.subr.mxu0 0.0
    %155 = vmatpush2.msra.mxu0 0.0
    %156 = vmatprep.subr.mxu0 0.0
    %157 = vmatpush2.msra.mxu0 0.0
    %158 = vmatprep.subr.mxu0 0.0
    %159 = vmatpush2.msra.mxu0 0.0
    %160 = vmatprep.subr.mxu0 0.0
    %161 = vmatpush2.msra.mxu0 0.0
    %162 = vmatprep.subr.mxu0 0.0
    %163 = vmatpush2.msra.mxu0 0.0
    %164 = vmatprep.subr.mxu0 0.0
    %165 = vmatpush2.msra.mxu0 0.0
    %166 = vmatprep.subr.mxu0 0.0
    %167 = vmatpush2.msra.mxu0 0.0
    %168 = vmatprep.subr.mxu0 0.0
    %169 = vmatpush2.msra.mxu0 0.0
    %170 = vmatprep.subr.mxu0 0.0
    %171 = vmatpush2.msra.mxu0 0.0
    %172 = vmatprep.subr.mxu0 0.0
    %173 = vmatpush2.msra.mxu0 0.0
    %174 = vmatprep.subr.mxu0 0.0
    %175 = vmatpush2.msra.mxu0 0.0
    %176 = vmatprep.subr.mxu0 0.0
    %177 = vmatpush2.msra.mxu0 0.0
    %178 = vmatprep.subr.mxu0 0.0
    %179 = vmatpush2.msra.mxu0 0.0
    %180 = vmatprep.subr.mxu0 0.0
    %181 = vmatpush2.msra.mxu0 0.0
    %182 = vmatprep.subr.mxu0 0.0
    %183 = vmatpush2.msra.mxu0 0.0
    %184 = vmatprep.subr.mxu0 0.0
    %185 = vmatpush2.msra.mxu0 0.0
    %186 = vmatprep.mubr.f32.mxu0 0.0
    %187 = vmatmul.mubr.f32.gmra.mxu0 %v40
    %v188 = vpop.f32.mrf.mxu0
    %v189 = vadd.f32 0.0, %v188
    %v190 = vpop.f32.mrf.mxu0
    %191 = vmatprep.mubr.f32.mxu0 0.0
    %192 = vmatmul.mubr.f32.gmra.mxu0 %v43
    %v193 = vpop.f32.mrf.mxu0
    %v194 = vadd.f32 0.0, %v193
    %v195 = vpop.f32.mrf.mxu0
    %196 = vdwg.mxu0
    %v197 = vsub.f32 %v189, %v36
    %v198 = vsub.f32 %v194, %v37
    %201 = vrot.lane.b32.xlu0 %v120, 4
    %v202 = vpop.permute.xlu0 %201
    %203 = vrot.lane.b32.xlu0 %v121, 4
    %v204 = vpop.permute.xlu0 %203
    %209 = vrot.lane.b32.xlu0 %v197, 8
    %v210 = vpop.permute.xlu0 %209
    %211 = vrot.lane.b32.xlu0 %v198, 8
    %v212 = vpop.permute.xlu0 %211
    %vm215 = vcmask 31744
    %v216 = vsel %vm215, %v36, %v202
    %v217 = vsel %vm215, %v37, %v204
    %vm218 = vcmask 64512
    %v219 = vsel %vm218, %v216, %v210
    %v220 = vsel %vm218, %v217, %v212
    %223 = vrot.lane.b32.xlu0 %v36, 124
    %v224 = vpop.permute.xlu0 %223
    %225 = vrot.lane.b32.xlu0 %v37, 124
    %v226 = vpop.permute.xlu0 %225
    %229 = vrot.lane.b32.xlu0 %v197, 4
    %v230 = vpop.permute.xlu0 %229
    %231 = vrot.lane.b32.xlu0 %v198, 4
    %v232 = vpop.permute.xlu0 %231
    %v235 = vsel %vm215, %v224, %v120
    %v236 = vsel %vm215, %v226, %v121
    %v237 = vsel %vm218, %v235, %v230
    %v238 = vsel %vm218, %v236, %v232
    %vm239 = vcmask 97280
    %v241 = vsel %vm239, %v219, 0
    %v244 = vsel %vm239, %v220, 0
    %v247 = vsel %vm239, %v237, 0
    %v250 = vsel %vm239, %v238, 0
    %vm252 = vcmask 1043456
    %v254 = vsel %vm252, %v35, 0
    %256 = vmatprep.subr.mxu0 0.0
    %257 = vmatpush1.msra.mxu0 0.0
    %258 = vmatprep.subr.mxu0 0.0
    %259 = vmatpush1.msra.mxu0 0.0
    %260 = vmatprep.subr.mxu0 0.0
    %261 = vmatpush1.msra.mxu0 0.0
    %262 = vmatprep.subr.mxu0 0.0
    %263 = vmatpush1.msra.mxu0 0.0
    %264 = vmatprep.subr.mxu0 0.0
    %265 = vmatpush1.msra.mxu0 0.0
    %266 = vmatprep.subr.mxu0 0.0
    %267 = vmatpush1.msra.mxu0 0.0
    %268 = vmatprep.subr.mxu0 0.0
    %269 = vmatpush1.msra.mxu0 0.0
    %270 = vmatprep.subr.mxu0 0.0
    %271 = vmatpush1.msra.mxu0 0.0
    %272 = vmatprep.subr.mxu0 0.0
    %273 = vmatpush1.msra.mxu0 0.0
    %274 = vmatprep.subr.mxu0 0.0
    %275 = vmatpush1.msra.mxu0 0.0
    %276 = vmatprep.subr.mxu0 0.0
    %277 = vmatpush1.msra.mxu0 0.0
    %278 = vmatprep.subr.mxu0 0.0
    %279 = vmatpush1.msra.mxu0 0.0
    %280 = vmatprep.subr.mxu0 0.0
    %281 = vmatpush1.msra.mxu0 0.0
    %282 = vmatprep.subr.mxu0 0.0
    %283 = vmatpush1.msra.mxu0 0.0
    %284 = vmatprep.subr.mxu0 0.0
    %285 = vmatpush1.msra.mxu0 %v254
    %286 = vmatprep.subr.mxu0 0.0
    %287 = vmatpush1.msra.mxu0 %v34
    %288 = vmatprep.subr.mxu0 0.0
    %289 = vmatpush2.msra.mxu0 0.0
    %290 = vmatprep.subr.mxu0 0.0
    %291 = vmatpush2.msra.mxu0 0.0
    %292 = vmatprep.subr.mxu0 0.0
    %293 = vmatpush2.msra.mxu0 0.0
    %294 = vmatprep.subr.mxu0 0.0
    %295 = vmatpush2.msra.mxu0 0.0
    %296 = vmatprep.subr.mxu0 0.0
    %297 = vmatpush2.msra.mxu0 0.0
    %298 = vmatprep.subr.mxu0 0.0
    %299 = vmatpush2.msra.mxu0 0.0
    %300 = vmatprep.subr.mxu0 0.0
    %301 = vmatpush2.msra.mxu0 0.0
    %302 = vmatprep.subr.mxu0 0.0
    %303 = vmatpush2.msra.mxu0 0.0
    %304 = vmatprep.subr.mxu0 0.0
    %305 = vmatpush2.msra.mxu0 0.0
    %306 = vmatprep.subr.mxu0 0.0
    %307 = vmatpush2.msra.mxu0 0.0
    %308 = vmatprep.subr.mxu0 0.0
    %309 = vmatpush2.msra.mxu0 0.0
    %310 = vmatprep.subr.mxu0 0.0
    %311 = vmatpush2.msra.mxu0 0.0
    %312 = vmatprep.subr.mxu0 0.0
    %313 = vmatpush2.msra.mxu0 0.0
    %314 = vmatprep.subr.mxu0 0.0
    %315 = vmatpush2.msra.mxu0 0.0
    %316 = vmatprep.subr.mxu0 0.0
    %317 = vmatpush2.msra.mxu0 0.0
    %318 = vmatprep.subr.mxu0 0.0
    %319 = vmatpush2.msra.mxu0 0.0
    %320 = vmatprep.mubr.f32.mxu0 0.0
    %321 = vmatmul.mubr.f32.gmra.mxu0 %v241
    %v322 = vpop.f32.mrf.mxu0
    %v323 = vadd.f32 0.0, %v322
    %v324 = vpop.f32.mrf.mxu0
    %325 = vmatprep.mubr.f32.mxu0 0.0
    %326 = vmatmul.mubr.f32.gmra.mxu0 %v244
    %v327 = vpop.f32.mrf.mxu0
    %v328 = vadd.f32 0.0, %v327
    %v329 = vpop.f32.mrf.mxu0
    %330 = vmatprep.mubr.f32.mxu0 0.0
    %331 = vmatmul.mubr.f32.gmra.mxu0 %v247
    %v332 = vpop.f32.mrf.mxu0
    %v333 = vadd.f32 0.0, %v332
    %v334 = vpop.f32.mrf.mxu0
    %335 = vmatprep.mubr.f32.mxu0 0.0
    %336 = vmatmul.mubr.f32.gmra.mxu0 %v250
    %v337 = vpop.f32.mrf.mxu0
    %v338 = vadd.f32 0.0, %v337
    %v339 = vpop.f32.mrf.mxu0
    %340 = vdwg.mxu0
    %v345 = vcombine.high %v323, %v323
    %v347 = vunpack.c.l.s4 1983009808
    %v348 = vunpack.c.0.s8 %v347
    %v349 = vlaneseq
    %v350 = vshrl.u32 %v349, 7
    %v351 = vsub.s32 %v348, %v350
    %v352 = vrot.slane %v323, %v351
    %v354 = vunpack.c.l.s4 1983009808
    %v355 = vunpack.c.0.s8 %v354
    %v356 = vlaneseq
    %v357 = vshrl.u32 %v356, 7
    %v358 = vsub.s32 %v355, %v357
    %v359 = vrot.slane %v345, %v358
    %v360 = vcombine.high %v352, %v352
    %v361 = vcombine.high %v359, %v359
    %v362 = vcombine.high %v328, %v328
    %v364 = vunpack.c.l.s4 1983009808
    %v365 = vunpack.c.0.s8 %v364
    %v366 = vlaneseq
    %v367 = vshrl.u32 %v366, 7
    %v368 = vsub.s32 %v365, %v367
    %v369 = vrot.slane %v328, %v368
    %v371 = vunpack.c.l.s4 1983009808
    %v372 = vunpack.c.0.s8 %v371
    %v373 = vlaneseq
    %v374 = vshrl.u32 %v373, 7
    %v375 = vsub.s32 %v372, %v374
    %v376 = vrot.slane %v362, %v375
    %v377 = vcombine.high %v369, %v369
    %v378 = vcombine.high %v376, %v376
    %v379 = vcombine.high %v333, %v333
    %v381 = vunpack.c.l.s4 1983009808
    %v382 = vunpack.c.0.s8 %v381
    %v383 = vlaneseq
    %v384 = vshrl.u32 %v383, 7
    %v385 = vsub.s32 %v382, %v384
    %v386 = vrot.slane %v333, %v385
    %v388 = vunpack.c.l.s4 1983009808
    %v389 = vunpack.c.0.s8 %v388
    %v390 = vlaneseq
    %v391 = vshrl.u32 %v390, 7
    %v392 = vsub.s32 %v389, %v391
    %v393 = vrot.slane %v379, %v392
    %v394 = vcombine.high %v386, %v386
    %v395 = vcombine.high %v393, %v393
    %v396 = vcombine.high %v338, %v338
    %v398 = vunpack.c.l.s4 1983009808
    %v399 = vunpack.c.0.s8 %v398
    %v400 = vlaneseq
    %v401 = vshrl.u32 %v400, 7
    %v402 = vsub.s32 %v399, %v401
    %v403 = vrot.slane %v338, %v402
    %v405 = vunpack.c.l.s4 1983009808
    %v406 = vunpack.c.0.s8 %v405
    %v407 = vlaneseq
    %v408 = vshrl.u32 %v407, 7
    %v409 = vsub.s32 %v406, %v408
    %v410 = vrot.slane %v396, %v409
    %v411 = vcombine.high %v403, %v403
    %v412 = vcombine.high %v410, %v410
    %vm429 = vcmask 1041408
    %v430 = vsel %vm429, %v352, -inf
    %v431 = vrot.slane %v430, 4
    %v432 = vmax.f32 %v430, %v431
    %v433 = vrot.slane %v432, 2
    %v434 = vmax.f32 %v432, %v433
    %v435 = vrot.slane %v434, 1
    %v436 = vmax.f32 %v434, %v435
    %v437 = vsel %vm429, %v360, -inf
    %v438 = vrot.slane %v437, 4
    %v439 = vmax.f32 %v437, %v438
    %v440 = vrot.slane %v439, 2
    %v441 = vmax.f32 %v439, %v440
    %v442 = vrot.slane %v441, 1
    %v443 = vmax.f32 %v441, %v442
    %v444 = vsel %vm429, %v359, -inf
    %v445 = vrot.slane %v444, 4
    %v446 = vmax.f32 %v444, %v445
    %v447 = vrot.slane %v446, 2
    %v448 = vmax.f32 %v446, %v447
    %v449 = vrot.slane %v448, 1
    %v450 = vmax.f32 %v448, %v449
    %v451 = vsel %vm429, %v361, -inf
    %v452 = vrot.slane %v451, 4
    %v453 = vmax.f32 %v451, %v452
    %v454 = vrot.slane %v453, 2
    %v455 = vmax.f32 %v453, %v454
    %v456 = vrot.slane %v455, 1
    %v457 = vmax.f32 %v455, %v456
    %v458 = vsel %vm429, %v369, -inf
    %v459 = vrot.slane %v458, 4
    %v460 = vmax.f32 %v458, %v459
    %v461 = vrot.slane %v460, 2
    %v462 = vmax.f32 %v460, %v461
    %v463 = vrot.slane %v462, 1
    %v464 = vmax.f32 %v462, %v463
    %v465 = vsel %vm429, %v377, -inf
    %v466 = vrot.slane %v465, 4
    %v467 = vmax.f32 %v465, %v466
    %v468 = vrot.slane %v467, 2
    %v469 = vmax.f32 %v467, %v468
    %v470 = vrot.slane %v469, 1
    %v471 = vmax.f32 %v469, %v470
    %v472 = vsel %vm429, %v376, -inf
    %v473 = vrot.slane %v472, 4
    %v474 = vmax.f32 %v472, %v473
    %v475 = vrot.slane %v474, 2
    %v476 = vmax.f32 %v474, %v475
    %v477 = vrot.slane %v476, 1
    %v478 = vmax.f32 %v476, %v477
    %v479 = vsel %vm429, %v378, -inf
    %v480 = vrot.slane %v479, 4
    %v481 = vmax.f32 %v479, %v480
    %v482 = vrot.slane %v481, 2
    %v483 = vmax.f32 %v481, %v482
    %v484 = vrot.slane %v483, 1
    %v485 = vmax.f32 %v483, %v484
    %v486 = vsel %vm429, %v386, -inf
    %v487 = vrot.slane %v486, 4
    %v488 = vmax.f32 %v486, %v487
    %v489 = vrot.slane %v488, 2
    %v490 = vmax.f32 %v488, %v489
    %v491 = vrot.slane %v490, 1
    %v492 = vmax.f32 %v490, %v491
    %v493 = vsel %vm429, %v394, -inf
    %v494 = vrot.slane %v493, 4
    %v495 = vmax.f32 %v493, %v494
    %v496 = vrot.slane %v495, 2
    %v497 = vmax.f32 %v495, %v496
    %v498 = vrot.slane %v497, 1
    %v499 = vmax.f32 %v497, %v498
    %v500 = vsel %vm429, %v393, -inf
    %v501 = vrot.slane %v500, 4
    %v502 = vmax.f32 %v500, %v501
    %v503 = vrot.slane %v502, 2
    %v504 = vmax.f32 %v502, %v503
    %v505 = vrot.slane %v504, 1
    %v506 = vmax.f32 %v504, %v505
    %v507 = vsel %vm429, %v395, -inf
    %v508 = vrot.slane %v507, 4
    %v509 = vmax.f32 %v507, %v508
    %v510 = vrot.slane %v509, 2
    %v511 = vmax.f32 %v509, %v510
    %v512 = vrot.slane %v511, 1
    %v513 = vmax.f32 %v511, %v512
    %v514 = vsel %vm429, %v403, -inf
    %v515 = vrot.slane %v514, 4
    %v516 = vmax.f32 %v514, %v515
    %v517 = vrot.slane %v516, 2
    %v518 = vmax.f32 %v516, %v517
    %v519 = vrot.slane %v518, 1
    %v520 = vmax.f32 %v518, %v519
    %v521 = vsel %vm429, %v411, -inf
    %v522 = vrot.slane %v521, 4
    %v523 = vmax.f32 %v521, %v522
    %v524 = vrot.slane %v523, 2
    %v525 = vmax.f32 %v523, %v524
    %v526 = vrot.slane %v525, 1
    %v527 = vmax.f32 %v525, %v526
    %v528 = vsel %vm429, %v410, -inf
    %v529 = vrot.slane %v528, 4
    %v530 = vmax.f32 %v528, %v529
    %v531 = vrot.slane %v530, 2
    %v532 = vmax.f32 %v530, %v531
    %v533 = vrot.slane %v532, 1
    %v534 = vmax.f32 %v532, %v533
    %v535 = vsel %vm429, %v412, -inf
    %v536 = vrot.slane %v535, 4
    %v537 = vmax.f32 %v535, %v536
    %v538 = vrot.slane %v537, 2
    %v539 = vmax.f32 %v537, %v538
    %v540 = vrot.slane %v539, 1
    %v541 = vmax.f32 %v539, %v540
    %v542 = vld [vmem:[%s3] sm:$0x1]
    %v544 = vlaneseq
    %v545 = vshrl.u32 %v544, 7
    %v546 = vsub.s32 0, %v545
    %v547 = vrot.slane %v542, %v546
    %v549 = vadd.f32 %v436, %v547
    %v550 = vadd.f32 %v443, %v547
    %v551 = vadd.f32 %v450, %v547
    %v552 = vadd.f32 %v457, %v547
    %v553 = vadd.f32 %v464, %v547
    %v554 = vadd.f32 %v471, %v547
    %v555 = vadd.f32 %v478, %v547
    %v556 = vadd.f32 %v485, %v547
    %v557 = vadd.f32 %v492, %v547
    %v558 = vadd.f32 %v499, %v547
    %v559 = vadd.f32 %v506, %v547
    %v560 = vadd.f32 %v513, %v547
    %v561 = vadd.f32 %v520, %v547
    %v562 = vadd.f32 %v527, %v547
    %v563 = vadd.f32 %v534, %v547
    %v564 = vadd.f32 %v541, %v547
    %v565 = vmax.f32 %v549, 0.0
    %v566 = vmax.f32 %v550, 0.0
    %v567 = vmax.f32 %v551, 0.0
    %v568 = vmax.f32 %v552, 0.0
    %v569 = vmax.f32 %v553, 0.0
    %v570 = vmax.f32 %v554, 0.0
    %v571 = vmax.f32 %v555, 0.0
    %v572 = vmax.f32 %v556, 0.0
    %v573 = vmax.f32 %v557, 0.0
    %v574 = vmax.f32 %v558, 0.0
    %v575 = vmax.f32 %v559, 0.0
    %v576 = vmax.f32 %v560, 0.0
    %v577 = vmax.f32 %v561, 0.0
    %v578 = vmax.f32 %v562, 0.0
    %v579 = vmax.f32 %v563, 0.0
    %v580 = vmax.f32 %v564, 0.0
    %v597 = vrot.slane %v566, 7
    %vm598 = vcmask 1041409
    %v599 = vsel %vm598, %v597, %v565
    %v600 = vrot.slane %v567, 6
    %vm601 = vcmask 1042434
    %v602 = vsel %vm601, %v600, %v599
    %v603 = vrot.slane %v568, 5
    %vm604 = vcmask 1043459
    %v605 = vsel %vm604, %v603, %v602
    %v606 = vrot.slane %v569, 4
    %vm607 = vcmask 1044484
    %v608 = vsel %vm607, %v606, %v605
    %v609 = vrot.slane %v570, 3
    %vm610 = vcmask 1045509
    %v611 = vsel %vm610, %v609, %v608
    %v612 = vrot.slane %v571, 2
    %vm613 = vcmask 1046534
    %v614 = vsel %vm613, %v612, %v611
    %v615 = vrot.slane %v572, 1
    %vm616 = vcmask 1047559
    %v617 = vsel %vm616, %v615, %v614
    %v618 = vrot.slane %v574, 7
    %v619 = vsel %vm598, %v618, %v573
    %v620 = vrot.slane %v575, 6
    %v621 = vsel %vm601, %v620, %v619
    %v622 = vrot.slane %v576, 5
    %v623 = vsel %vm604, %v622, %v621
    %v624 = vrot.slane %v577, 4
    %v625 = vsel %vm607, %v624, %v623
    %v626 = vrot.slane %v578, 3
    %v627 = vsel %vm610, %v626, %v625
    %v628 = vrot.slane %v579, 2
    %v629 = vsel %vm613, %v628, %v627
    %v630 = vrot.slane %v580, 1
    %v631 = vsel %vm616, %v630, %v629
    %634 = vst [vmem:[#allocation5] sm:$0xff] %v617
    %635 = vst [vmem:[#allocation5 + $0x8] sm:$0xff] %v631
    // Predicated region
    $region22: #{tpu_custom_call.1} parent=1 // pred_check
      _
    $region23: #{tpu_custom_call.1} parent=1 // pred_check_branch
      %637 = sbr.rel (0) target = $region25
    $region24: #{tpu_custom_call.1} parent=1 // pred_region
      %s639 = ssub.s32 256, 256
      %640 = vsyncadd [#allocation4], %s639
      %s641 = sshll.u32 [#allocation5], 4
      %s642 = int_to_ptr.vmem [resolvable:$true] %s641
      %647 = dma.vmem_to_hbm [thread:$0]  %s642, 256, %s4, [#allocation4], 128, 128, 8
    $region25: #{tpu_custom_call.1} parent=1 // pred_fallthru
      _
    // Predicated region
    $region26: #{tpu_custom_call.1} parent=1 // pred_check
      _
    $region27: #{tpu_custom_call.1} parent=1 // pred_check_branch
      %649 = sbr.rel (0) target = $region29
    $region28: #{tpu_custom_call.1} parent=1 // pred_region
      %650 = dma.done [#allocation4], 256
    $region29: #{tpu_custom_call.1} parent=1 // pred_fallthru
      _
    %651 = vsyncpa [#allocation3], 1
    %652 = vsyncpa [#allocation4], 1

</llo_original>
